<compile_context>
chip_gen: v7x
topology: tpu7x:2x2x1
jax: 0.10.0
libtpu: 0.0.40
codegen_flags: <defaults>
</compile_context>

<pallas_src>
import functools

import jax
import jax.numpy as jnp
from jax.experimental import pallas as pl
from jax.experimental.pallas import tpu as pltpu

N_EMBD = 144
HIDDEN = 4 * N_EMBD  # 576

_MIN_ROWS_FOR_SPLIT = 512  # force >=2 grid steps (megacore sharding) above this


def _round_up(a, b):
    return -(-a // b) * b


def _cdiv(a, b):
    return -(-a // b)


def _ffn_kernel(x_ref, w1_ref, b1_ref, w2_ref, b2_ref, o_ref, *, compute_dtype):
    # x_ref:  (tm, C)   w1_ref: (C, H)   b1_ref: (1, H)
    # w2_ref: (H, C)    b2_ref: (1, C)   o_ref:  (tm, C)
    # All casts below are no-ops when dtypes already match.
    x = x_ref[...].astype(compute_dtype)

    # Linear 1 (MXU, matched operand dtypes, f32 accumulate) + bias + ReLU (f32).
    h = jnp.dot(x, w1_ref[...].astype(compute_dtype),
                preferred_element_type=jnp.float32)
    h = jnp.maximum(h + b1_ref[...].astype(jnp.float32), 0.0)

    # Linear 2: narrow the activation to the compute dtype for the MXU,
    # accumulate in f32, add bias in f32.
    y = jnp.dot(h.astype(compute_dtype), w2_ref[...].astype(compute_dtype),
                preferred_element_type=jnp.float32)
    y = y + b2_ref[...].astype(jnp.float32)

    # Dropout: eval mode -> identity.
    o_ref[...] = y.astype(o_ref.dtype)


def _choose_tile(M, tm_max):
    """Balanced row tile: multiple of 8, <= tm_max, minimal tail waste,
    and an even number of >= 2 grid steps when there is enough work (v7x)."""
    M8 = _round_up(max(M, 1), 8)
    if M8 <= tm_max:
        n = 2 if M8 >= _MIN_ROWS_FOR_SPLIT else 1
    else:
        n = _cdiv(M8, tm_max)
    if n > 1 and n % 2:
        n += 1  # even step count -> balanced across v7x's two TensorCores
    tm = _round_up(_cdiv(M8, n), 8)
    return tm, tm * n  # (tile rows, padded M)


def feed_forward(x, w1, b1, w2, b2, *, tm_max=2048, compute_dtype=None):
    """x: (B, T, C).  w1: (C, H), b1: (H,), w2: (H, C), b2: (C,).

    compute_dtype: MXU operand dtype. Defaults to the weight dtype (so bf16
    weights take the fast bf16 MXU path natively); pass jnp.bfloat16 to force
    the bf16 path with f32 weights (useful on v5e / v7x where the f32 MXU
    pass is the binding slot).
    """
    B, T, C = x.shape
    H = w1.shape[1]
    M = B * T

    cd = jnp.dtype(compute_dtype) if compute_dtype is not None else jnp.dtype(w1.dtype)

    tm_eff, M_pad = _choose_tile(M, tm_max)

    x2 = x.reshape(M, C)
    if M_pad != M:
        x2 = jnp.pad(x2, ((0, M_pad - M), (0, 0)))  # zero rows: exact, sliced off below
    b1r = b1.reshape(1, H)
    b2r = b2.reshape(1, C)

    # Deliberate VMEM budget: double-buffered x/out tiles + resident weights
    # (pipeline allocates 2 buffers each) + f32 intermediates + headroom.
    x_bytes = jnp.dtype(x.dtype).itemsize
    w_bytes = jnp.dtype(w1.dtype).itemsize
    streamed = 2 * 2 * tm_eff * C * x_bytes
    resident = 2 * (C * H + H * C + H + C) * w_bytes
    scratch = tm_eff * (H + C) * 4
    vmem_limit = min(max(streamed + resident + scratch + (8 << 20), 16 << 20), 48 << 20)

    kernel = functools.partial(_ffn_kernel, compute_dtype=cd)

    out = pl.pallas_call(
        kernel,
        out_shape=jax.ShapeDtypeStruct((M_pad, C), x.dtype),
        grid_spec=pltpu.PrefetchScalarGridSpec(
            num_scalar_prefetch=0,
            grid=(M_pad // tm_eff,),
            in_specs=[
                pl.BlockSpec((tm_eff, C), lambda i: (i, 0)),  # x rows (streamed)
                pl.BlockSpec((C, H), lambda i: (0, 0)),       # W1 (VMEM-resident)
                pl.BlockSpec((1, H), lambda i: (0, 0)),       # b1 (resident)
                pl.BlockSpec((H, C), lambda i: (0, 0)),       # W2 (resident)
                pl.BlockSpec((1, C), lambda i: (0, 0)),       # b2 (resident)
            ],
            out_specs=pl.BlockSpec((tm_eff, C), lambda i: (i, 0)),
        ),
        compiler_params=pltpu.CompilerParams(
            dimension_semantics=("parallel",),
            vmem_limit_bytes=int(vmem_limit),
        ),
    )(x2, w1, b1r, w2, b2r)

    return out[:M].reshape(B, T, C)


def _reference(x, w1, b1, w2, b2):
    h = jnp.maximum(x @ w1 + b1, 0.0)
    return h @ w2 + b2


if __name__ == "__main__":
    key = jax.random.PRNGKey(0)
    k_x, k_w1, k_b1, k_w2, k_b2, k_x2 = jax.random.split(key, 6)

    # Deterministic init mimicking nn.Linear default (uniform +/- 1/sqrt(fan_in)).
    lim1 = 1.0 / (N_EMBD ** 0.5)
    lim2 = 1.0 / (HIDDEN ** 0.5)
    w1 = jax.random.uniform(k_w1, (N_EMBD, HIDDEN), jnp.float32, -lim1, lim1)
    b1 = jax.random.uniform(k_b1, (HIDDEN,), jnp.float32, -lim1, lim1)
    w2 = jax.random.uniform(k_w2, (HIDDEN, N_EMBD), jnp.float32, -lim2, lim2)
    b2 = jax.random.uniform(k_b2, (N_EMBD,), jnp.float32, -lim2, lim2)

    # Small primary test (B=2, T=8) -> single grid step, unpadded lanes.
    B, T = 2, 8
    x = jax.random.normal(k_x, (B, T, N_EMBD), dtype=jnp.float32)
    y = feed_forward(x, w1, b1, w2, b2)
    jax.block_until_ready(y)
    y_ref = _reference(x, w1, b1, w2, b2)
    assert y.shape == x.shape
    assert jnp.allclose(y, y_ref, atol=1e-4, rtol=1e-4), "mismatch vs reference (small)"

    # Multi-step grid with balanced tiles (M=600 -> 2 steps of 304 rows, <8 pad rows).
    B2, T2 = 3, 200
    xb = jax.random.normal(k_x2, (B2, T2, N_EMBD), dtype=jnp.float32)
    yb = feed_forward(xb, w1, b1, w2, b2)
    jax.block_until_ready(yb)
    yb_ref = _reference(xb, w1, b1, w2, b2)
    assert yb.shape == xb.shape
    assert jnp.allclose(yb, yb_ref, atol=1e-4, rtol=1e-4), "mismatch vs reference (tiled)"

    # bf16 MXU compute path (f32 accumulate) -- looser tolerance.
    yc = feed_forward(xb, w1, b1, w2, b2, compute_dtype=jnp.bfloat16)
    jax.block_until_ready(yc)
    assert jnp.allclose(yc, yb_ref, atol=2e-1, rtol=1e-1), "mismatch vs reference (bf16 path)"

    print("KERNEL_OK")
</pallas_src>

<mosaic_0001>
module attributes {stable_mosaic.version = 11 : i64} {
  func.func @_ffn_kernel(%arg0: i32, %arg1: memref<16x144xf32, #tpu.memory_space<vmem>>, %arg2: memref<144x576xf32, #tpu.memory_space<vmem>>, %arg3: memref<1x576xf32, #tpu.memory_space<vmem>>, %arg4: memref<576x144xf32, #tpu.memory_space<vmem>>, %arg5: memref<1x144xf32, #tpu.memory_space<vmem>>, %arg6: memref<16x144xf32, #tpu.memory_space<vmem>>) attributes {dimension_semantics = [#tpu.dimension_semantics<parallel>], iteration_bounds = array<i64: 1>, scalar_prefetch = 0 : i64, scratch_operands = 0 : i64, tpu.core_type = #tpu.core_type<tc>, window_params = [{transform_indices = @transform_0, window_bounds = array<i64: 16, 144>}, {pipeline_mode = #tpu.pipeline_mode<synchronous>, transform_indices = @transform_1, window_bounds = array<i64: 144, 576>}, {pipeline_mode = #tpu.pipeline_mode<synchronous>, transform_indices = @transform_2, window_bounds = array<i64: 1, 576>}, {pipeline_mode = #tpu.pipeline_mode<synchronous>, transform_indices = @transform_3, window_bounds = array<i64: 576, 144>}, {pipeline_mode = #tpu.pipeline_mode<synchronous>, transform_indices = @transform_4, window_bounds = array<i64: 1, 144>}, {transform_indices = @transform_5, window_bounds = array<i64: 16, 144>}]} {
    %c0 = arith.constant 0 : index
    %c0_0 = arith.constant 0 : index
    %0 = vector.load %arg1[%c0, %c0_0] : memref<16x144xf32, #tpu.memory_space<vmem>>, vector<16x144xf32>
    %c0_1 = arith.constant 0 : index
    %c0_2 = arith.constant 0 : index
    %1 = vector.load %arg2[%c0_1, %c0_2] : memref<144x576xf32, #tpu.memory_space<vmem>>, vector<144x576xf32>
    %cst = arith.constant dense<0.000000e+00> : vector<16x576xf32>
    %2 = tpu.matmul %0, %1, %cst {dimension_numbers = #tpu.dot_dimension_numbers<[1], [0], [0], [1], [0, 0, 1, 1], [], []>} : vector<16x144xf32>, vector<144x576xf32>, vector<16x576xf32> -> vector<16x576xf32>
    %c0_3 = arith.constant 0 : index
    %c0_4 = arith.constant 0 : index
    %3 = vector.load %arg3[%c0_3, %c0_4] : memref<1x576xf32, #tpu.memory_space<vmem>>, vector<1x576xf32>
    %4 = vector.broadcast %3 : vector<1x576xf32> to vector<16x576xf32>
    %5 = arith.addf %2, %4 : vector<16x576xf32>
    %cst_5 = arith.constant 0.000000e+00 : f32
    %6 = vector.broadcast %cst_5 : f32 to vector<16x576xf32>
    %7 = arith.maximumf %5, %6 : vector<16x576xf32>
    %c0_6 = arith.constant 0 : index
    %c0_7 = arith.constant 0 : index
    %8 = vector.load %arg4[%c0_6, %c0_7] : memref<576x144xf32, #tpu.memory_space<vmem>>, vector<576x144xf32>
    %cst_8 = arith.constant dense<0.000000e+00> : vector<16x144xf32>
    %9 = tpu.matmul %7, %8, %cst_8 {dimension_numbers = #tpu.dot_dimension_numbers<[1], [0], [0], [1], [0, 0, 1, 1], [], []>} : vector<16x576xf32>, vector<576x144xf32>, vector<16x144xf32> -> vector<16x144xf32>
    %c0_9 = arith.constant 0 : index
    %c0_10 = arith.constant 0 : index
    %10 = vector.load %arg5[%c0_9, %c0_10] : memref<1x144xf32, #tpu.memory_space<vmem>>, vector<1x144xf32>
    %11 = vector.broadcast %10 : vector<1x144xf32> to vector<16x144xf32>
    %12 = arith.addf %9, %11 : vector<16x144xf32>
    %c0_11 = arith.constant 0 : index
    %c0_12 = arith.constant 0 : index
    %13 = vector.load %arg6[%c0_11, %c0_12] : memref<16x144xf32, #tpu.memory_space<vmem>>, vector<16x144xf32>
    tpu.vector_store %arg6[%c0_11, %c0_12], %12 {strides = array<i32>} : memref<16x144xf32, #tpu.memory_space<vmem>>, vector<16x144xf32>,
    return
  }
  func.func @transform_0(%arg0: i32) -> (i32, i32) {
    %c0_i32 = arith.constant 0 : i32
    %c0_i32_0 = arith.constant 0 : i32
    return %arg0, %c0_i32 : i32, i32
  }
  func.func @transform_1(%arg0: i32) -> (i32, i32) {
    %c0_i32 = arith.constant 0 : i32
    %c0_i32_0 = arith.constant 0 : i32
    %c0_i32_1 = arith.constant 0 : i32
    return %c0_i32, %c0_i32_0 : i32, i32
  }
  func.func @transform_2(%arg0: i32) -> (i32, i32) {
    %c0_i32 = arith.constant 0 : i32
    %c0_i32_0 = arith.constant 0 : i32
    %c0_i32_1 = arith.constant 0 : i32
    return %c0_i32, %c0_i32_0 : i32, i32
  }
  func.func @transform_3(%arg0: i32) -> (i32, i32) {
    %c0_i32 = arith.constant 0 : i32
    %c0_i32_0 = arith.constant 0 : i32
    %c0_i32_1 = arith.constant 0 : i32
    return %c0_i32, %c0_i32_0 : i32, i32
  }
  func.func @transform_4(%arg0: i32) -> (i32, i32) {
    %c0_i32 = arith.constant 0 : i32
    %c0_i32_0 = arith.constant 0 : i32
    %c0_i32_1 = arith.constant 0 : i32
    return %c0_i32, %c0_i32_0 : i32, i32
  }
  func.func @transform_5(%arg0: i32) -> (i32, i32) {
    %c0_i32 = arith.constant 0 : i32
    %c0_i32_0 = arith.constant 0 : i32
    return %arg0, %c0_i32 : i32, i32
  }
}

</mosaic_0001>

<llo_original>
// kernel: tpu_custom_call.1
$region0: #{tpu_custom_call.1}
  #allocation0 [shape = 'u32[]', space=smem, size = 0x4, offset = 0x4, fixed_abs, tag = 'smem constant byte address 0x4 - core index']
  #allocation1 [shape = 'u32[144,128]{1,0:T(1,128)}', space=vmem, size = 0x12000, scoped, tag = 'internal scratch']
  %s0 = inlined_call_operand.vmem [shape: f32[16,144], index: 0, kind: input, shape index: {}]
  %s1 = inlined_call_operand.vmem [shape: f32[144,576], index: 1, kind: input, shape index: {}]
  %s2 = inlined_call_operand.vmem [shape: f32[1,576], index: 2, kind: input, shape index: {}]
  %s3 = inlined_call_operand.vmem [shape: f32[576,144], index: 3, kind: input, shape index: {}]
  %s4 = inlined_call_operand.vmem [shape: f32[1,144], index: 4, kind: input, shape index: {}]
  %s5 = inlined_call_operand.hbm [shape: f32[16,144], index: 5, kind: output, shape index: {}]
  %s6 = sld [smem:[#allocation0]]
  $region30: #{tpu_custom_call.1} parent=0
    _
  %s8 = ssub.s32 1, %s6
  %s9 = scalar_select 0, %s8, %s6
  $region1: #{tpu_custom_call.1} parent=0
    #allocation2 [shape = 'u8[16384]{0}', space=vmem, size = 0x4000, scoped, tag = 'output window, operand 0, single buffered']
    #allocation3 [shape = 's32[1]{0}', space=sflag, size = 0x4, scoped, tag = 'scoped memory for tpu_custom_call.1']
    %10 = vsyncpa [#allocation3], 0
    // Predicated region
    $region2: #{tpu_custom_call.1} parent=1 // pred_check
      _
    $region3: #{tpu_custom_call.1} parent=1 // pred_check_branch
      %12 = sbr.rel (0) target = $region5
    $region4: #{tpu_custom_call.1} parent=1 // pred_region
      _
    $region5: #{tpu_custom_call.1} parent=1 // pred_fallthru
      _
    // Predicated region
    $region6: #{tpu_custom_call.1} parent=1 // pred_check
      _
    $region7: #{tpu_custom_call.1} parent=1 // pred_check_branch
      %14 = sbr.rel (0) target = $region9
    $region8: #{tpu_custom_call.1} parent=1 // pred_region
      _
    $region9: #{tpu_custom_call.1} parent=1 // pred_fallthru
      _
    // Predicated region
    $region10: #{tpu_custom_call.1} parent=1 // pred_check
      _
    $region11: #{tpu_custom_call.1} parent=1 // pred_check_branch
      %16 = sbr.rel (0) target = $region13
    $region12: #{tpu_custom_call.1} parent=1 // pred_region
      _
    $region13: #{tpu_custom_call.1} parent=1 // pred_fallthru
      _
    // Predicated region
    $region14: #{tpu_custom_call.1} parent=1 // pred_check
      _
    $region15: #{tpu_custom_call.1} parent=1 // pred_check_branch
      %18 = sbr.rel (0) target = $region17
    $region16: #{tpu_custom_call.1} parent=1 // pred_region
      _
    $region17: #{tpu_custom_call.1} parent=1 // pred_fallthru
      _
    // Predicated region
    $region18: #{tpu_custom_call.1} parent=1 // pred_check
      _
    $region19: #{tpu_custom_call.1} parent=1 // pred_check_branch
      %20 = sbr.rel (0) target = $region21
    $region20: #{tpu_custom_call.1} parent=1 // pred_region
      _
    $region21: #{tpu_custom_call.1} parent=1 // pred_fallthru
      _
    %v21 = vld [vmem:[%s0] sm:$0xff]
    %v22 = vld [vmem:[%s0 + $0x8] sm:$0xff]
    %v23 = vld [vmem:[%s0 + $0x10] sm:$0xff]
    %v24 = vld [vmem:[%s0 + $0x18] sm:$0xff]
    %v25 = vld [vmem:[%s1] sm:$0xff]
    %v26 = vld [vmem:[%s1 + $0x8] sm:$0xff]
    %v27 = vld [vmem:[%s1 + $0x10] sm:$0xff]
    %v28 = vld [vmem:[%s1 + $0x18] sm:$0xff]
    %v29 = vld [vmem:[%s1 + $0x20] sm:$0xff]
    %v30 = vld [vmem:[%s1 + $0x28] sm:$0xff]
    %v31 = vld [vmem:[%s1 + $0x30] sm:$0xff]
    %v32 = vld [vmem:[%s1 + $0x38] sm:$0xff]
    %v33 = vld [vmem:[%s1 + $0x40] sm:$0xff]
    %v34 = vld [vmem:[%s1 + $0x48] sm:$0xff]
    %v35 = vld [vmem:[%s1 + $0x50] sm:$0xff]
    %v36 = vld [vmem:[%s1 + $0x58] sm:$0xff]
    %v37 = vld [vmem:[%s1 + $0x60] sm:$0xff]
    %v38 = vld [vmem:[%s1 + $0x68] sm:$0xff]
    %v39 = vld [vmem:[%s1 + $0x70] sm:$0xff]
    %v40 = vld [vmem:[%s1 + $0x78] sm:$0xff]
    %v41 = vld [vmem:[%s1 + $0x80] sm:$0xff]
    %v42 = vld [vmem:[%s1 + $0x88] sm:$0xff]
    %v43 = vld [vmem:[%s1 + $0x90] sm:$0xff]
    %v44 = vld [vmem:[%s1 + $0x98] sm:$0xff]
    %v45 = vld [vmem:[%s1 + $0xa0] sm:$0xff]
    %v46 = vld [vmem:[%s1 + $0xa8] sm:$0xff]
    %v47 = vld [vmem:[%s1 + $0xb0] sm:$0xff]
    %v48 = vld [vmem:[%s1 + $0xb8] sm:$0xff]
    %v49 = vld [vmem:[%s1 + $0xc0] sm:$0xff]
    %v50 = vld [vmem:[%s1 + $0xc8] sm:$0xff]
    %v51 = vld [vmem:[%s1 + $0xd0] sm:$0xff]
    %v52 = vld [vmem:[%s1 + $0xd8] sm:$0xff]
    %v53 = vld [vmem:[%s1 + $0xe0] sm:$0xff]
    %v54 = vld [vmem:[%s1 + $0xe8] sm:$0xff]
    %v55 = vld [vmem:[%s1 + $0xf0] sm:$0xff]
    %v56 = vld [vmem:[%s1 + $0xf8] sm:$0xff]
    %v57 = vld [vmem:[%s1 + $0x100] sm:$0xff]
    %v58 = vld [vmem:[%s1 + $0x108] sm:$0xff]
    %v59 = vld [vmem:[%s1 + $0x110] sm:$0xff]
    %v60 = vld [vmem:[%s1 + $0x118] sm:$0xff]
    %v61 = vld [vmem:[%s1 + $0x120] sm:$0xff]
    %v62 = vld [vmem:[%s1 + $0x128] sm:$0xff]
    %v63 = vld [vmem:[%s1 + $0x130] sm:$0xff]
    %v64 = vld [vmem:[%s1 + $0x138] sm:$0xff]
    %v65 = vld [vmem:[%s1 + $0x140] sm:$0xff]
    %v66 = vld [vmem:[%s1 + $0x148] sm:$0xff]
    %v67 = vld [vmem:[%s1 + $0x150] sm:$0xff]
    %v68 = vld [vmem:[%s1 + $0x158] sm:$0xff]
    %v69 = vld [vmem:[%s1 + $0x160] sm:$0xff]
    %v70 = vld [vmem:[%s1 + $0x168] sm:$0xff]
    %v71 = vld [vmem:[%s1 + $0x170] sm:$0xff]
    %v72 = vld [vmem:[%s1 + $0x178] sm:$0xff]
    %v73 = vld [vmem:[%s1 + $0x180] sm:$0xff]
    %v74 = vld [vmem:[%s1 + $0x188] sm:$0xff]
    %v75 = vld [vmem:[%s1 + $0x190] sm:$0xff]
    %v76 = vld [vmem:[%s1 + $0x198] sm:$0xff]
    %v77 = vld [vmem:[%s1 + $0x1a0] sm:$0xff]
    %v78 = vld [vmem:[%s1 + $0x1a8] sm:$0xff]
    %v79 = vld [vmem:[%s1 + $0x1b0] sm:$0xff]
    %v80 = vld [vmem:[%s1 + $0x1b8] sm:$0xff]
    %v81 = vld [vmem:[%s1 + $0x1c0] sm:$0xff]
    %v82 = vld [vmem:[%s1 + $0x1c8] sm:$0xff]
    %v83 = vld [vmem:[%s1 + $0x1d0] sm:$0xff]
    %v84 = vld [vmem:[%s1 + $0x1d8] sm:$0xff]
    %v85 = vld [vmem:[%s1 + $0x1e0] sm:$0xff]
    %v86 = vld [vmem:[%s1 + $0x1e8] sm:$0xff]
    %v87 = vld [vmem:[%s1 + $0x1f0] sm:$0xff]
    %v88 = vld [vmem:[%s1 + $0x1f8] sm:$0xff]
    %v89 = vld [vmem:[%s1 + $0x200] sm:$0xff]
    %v90 = vld [vmem:[%s1 + $0x208] sm:$0xff]
    %v91 = vld [vmem:[%s1 + $0x210] sm:$0xff]
    %v92 = vld [vmem:[%s1 + $0x218] sm:$0xff]
    %v93 = vld [vmem:[%s1 + $0x220] sm:$0xff]
    %v94 = vld [vmem:[%s1 + $0x228] sm:$0xff]
    %v95 = vld [vmem:[%s1 + $0x230] sm:$0xff]
    %v96 = vld [vmem:[%s1 + $0x238] sm:$0xff]
    %v97 = vld [vmem:[%s1 + $0x240] sm:$0xff]
    %v98 = vld [vmem:[%s1 + $0x248] sm:$0xff]
    %v99 = vld [vmem:[%s1 + $0x250] sm:$0xff]
    %v100 = vld [vmem:[%s1 + $0x258] sm:$0xff]
    %v101 = vld [vmem:[%s1 + $0x260] sm:$0xff]
    %v102 = vld [vmem:[%s1 + $0x268] sm:$0xff]
    %v103 = vld [vmem:[%s1 + $0x270] sm:$0xff]
    %v104 = vld [vmem:[%s1 + $0x278] sm:$0xff]
    %v105 = vld [vmem:[%s1 + $0x280] sm:$0xff]
    %v106 = vld [vmem:[%s1 + $0x288] sm:$0xff]
    %v107 = vld [vmem:[%s1 + $0x290] sm:$0xff]
    %v108 = vld [vmem:[%s1 + $0x298] sm:$0xff]
    %v109 = vld [vmem:[%s1 + $0x2a0] sm:$0xff]
    %v110 = vld [vmem:[%s1 + $0x2a8] sm:$0xff]
    %v111 = vld [vmem:[%s1 + $0x2b0] sm:$0xff]
    %v112 = vld [vmem:[%s1 + $0x2b8] sm:$0xff]
    %v113 = vld [vmem:[%s1 + $0x2c0] sm:$0xff]
    %v114 = vld [vmem:[%s1 + $0x2c8] sm:$0xff]
    %v115 = vld [vmem:[%s2] sm:$0x1f]
    %v117 = vlaneseq
    %v118 = vshrl.u32 %v117, 7
    %v119 = vsub.s32 0, %v118
    %v120 = vrot.slane %v115, %v119
    %v121 = vlaneseq
    %v122 = vshrl.u32 %v121, 7
    %v123 = vsub.s32 1, %v122
    %v124 = vrot.slane %v115, %v123
    %v125 = vlaneseq
    %v126 = vshrl.u32 %v125, 7
    %v127 = vsub.s32 2, %v126
    %v128 = vrot.slane %v115, %v127
    %v129 = vlaneseq
    %v130 = vshrl.u32 %v129, 7
    %v131 = vsub.s32 3, %v130
    %v132 = vrot.slane %v115, %v131
    %v133 = vlaneseq
    %v134 = vshrl.u32 %v133, 7
    %v135 = vsub.s32 4, %v134
    %v136 = vrot.slane %v115, %v135
    %vm142 = vcmask 130048
    %v144 = vsel %vm142, %v22, 0
    %v147 = vsel %vm142, %v24, 0
    %149 = vmatprep.subr.mxu0 %v26
    %150 = vmatpush1.msra.mxu0 %v25
    %151 = vmatprep.subr.mxu0 %v31
    %152 = vmatpush1.msra.mxu0 %v30
    %153 = vmatprep.subr.mxu0 %v36
    %154 = vmatpush1.msra.mxu0 %v35
    %155 = vmatprep.subr.mxu0 %v41
    %156 = vmatpush1.msra.mxu0 %v40
    %157 = vmatprep.subr.mxu0 %v46
    %158 = vmatpush1.msra.mxu0 %v45
    %159 = vmatprep.subr.mxu0 %v51
    %160 = vmatpush1.msra.mxu0 %v50
    %161 = vmatprep.subr.mxu0 %v56
    %162 = vmatpush1.msra.mxu0 %v55
    %163 = vmatprep.subr.mxu0 %v61
    %164 = vmatpush1.msra.mxu0 %v60
    %165 = vmatprep.subr.mxu0 %v66
    %166 = vmatpush1.msra.mxu0 %v65
    %167 = vmatprep.subr.mxu0 %v71
    %168 = vmatpush1.msra.mxu0 %v70
    %169 = vmatprep.subr.mxu0 %v76
    %170 = vmatpush1.msra.mxu0 %v75
    %171 = vmatprep.subr.mxu0 %v81
    %172 = vmatpush1.msra.mxu0 %v80
    %173 = vmatprep.subr.mxu0 %v86
    %174 = vmatpush1.msra.mxu0 %v85
    %175 = vmatprep.subr.mxu0 %v91
    %176 = vmatpush1.msra.mxu0 %v90
    %177 = vmatprep.subr.mxu0 %v96
    %178 = vmatpush1.msra.mxu0 %v95
    %179 = vmatprep.subr.mxu0 %v101
    %180 = vmatpush1.msra.mxu0 %v100
    %181 = vmatprep.subr.mxu0 %v106
    %182 = vmatpush1.msra.mxu0 %v105
    %183 = vmatprep.subr.mxu0 %v111
    %184 = vmatpush1.msra.mxu0 %v110
    %185 = vmatprep.subr.mxu0 0.0
    %186 = vmatpush1.msra.mxu0 0.0
    %187 = vmatprep.subr.mxu0 0.0
    %188 = vmatpush1.msra.mxu0 0.0
    %189 = vmatprep.subr.mxu0 0.0
    %190 = vmatpush1.msra.mxu0 0.0
    %191 = vmatprep.subr.mxu0 0.0
    %192 = vmatpush1.msra.mxu0 0.0
    %193 = vmatprep.subr.mxu0 0.0
    %194 = vmatpush1.msra.mxu0 0.0
    %195 = vmatprep.subr.mxu0 0.0
    %196 = vmatpush1.msra.mxu0 0.0
    %197 = vmatprep.subr.mxu0 0.0
    %198 = vmatpush1.msra.mxu0 0.0
    %199 = vmatprep.subr.mxu0 0.0
    %200 = vmatpush1.msra.mxu0 0.0
    %201 = vmatprep.subr.mxu0 0.0
    %202 = vmatpush1.msra.mxu0 0.0
    %203 = vmatprep.subr.mxu0 0.0
    %204 = vmatpush1.msra.mxu0 0.0
    %205 = vmatprep.subr.mxu0 0.0
    %206 = vmatpush1.msra.mxu0 0.0
    %207 = vmatprep.subr.mxu0 0.0
    %208 = vmatpush1.msra.mxu0 0.0
    %209 = vmatprep.subr.mxu0 0.0
    %210 = vmatpush1.msra.mxu0 0.0
    %211 = vmatprep.subr.mxu0 0.0
    %212 = vmatpush1.msra.mxu0 0.0
    %213 = vmatprep.mubr.f32.mxu0 %v144
    %214 = vmatmul.mubr.f32.gmra.mrb[0].mxu0 %v21
    %v215 = vpop.f32.mrb[0].mxu0
    %v216 = vadd.f32 %v120, %v215
    %v217 = vpop.f32.mrb[0].mxu0
    %v218 = vadd.f32 %v124, %v217
    %219 = vmatprep.mubr.f32.mxu0 %v147
    %220 = vmatmul.mubr.f32.gmra.mrb[0].mxu0 %v23
    %v221 = vpop.f32.mrb[0].mxu0
    %v222 = vadd.f32 %v120, %v221
    %v223 = vpop.f32.mrb[0].mxu0
    %v224 = vadd.f32 %v124, %v223
    %225 = vdwg.mxu0
    %226 = vmatprep.subr.mxu0 %v28
    %227 = vmatpush1.msra.mxu0 %v27
    %228 = vmatprep.subr.mxu0 %v33
    %229 = vmatpush1.msra.mxu0 %v32
    %230 = vmatprep.subr.mxu0 %v38
    %231 = vmatpush1.msra.mxu0 %v37
    %232 = vmatprep.subr.mxu0 %v43
    %233 = vmatpush1.msra.mxu0 %v42
    %234 = vmatprep.subr.mxu0 %v48
    %235 = vmatpush1.msra.mxu0 %v47
    %236 = vmatprep.subr.mxu0 %v53
    %237 = vmatpush1.msra.mxu0 %v52
    %238 = vmatprep.subr.mxu0 %v58
    %239 = vmatpush1.msra.mxu0 %v57
    %240 = vmatprep.subr.mxu0 %v63
    %241 = vmatpush1.msra.mxu0 %v62
    %242 = vmatprep.subr.mxu0 %v68
    %243 = vmatpush1.msra.mxu0 %v67
    %244 = vmatprep.subr.mxu0 %v73
    %245 = vmatpush1.msra.mxu0 %v72
    %246 = vmatprep.subr.mxu0 %v78
    %247 = vmatpush1.msra.mxu0 %v77
    %248 = vmatprep.subr.mxu0 %v83
    %249 = vmatpush1.msra.mxu0 %v82
    %250 = vmatprep.subr.mxu0 %v88
    %251 = vmatpush1.msra.mxu0 %v87
    %252 = vmatprep.subr.mxu0 %v93
    %253 = vmatpush1.msra.mxu0 %v92
    %254 = vmatprep.subr.mxu0 %v98
    %255 = vmatpush1.msra.mxu0 %v97
    %256 = vmatprep.subr.mxu0 %v103
    %257 = vmatpush1.msra.mxu0 %v102
    %258 = vmatprep.subr.mxu0 %v108
    %259 = vmatpush1.msra.mxu0 %v107
    %260 = vmatprep.subr.mxu0 %v113
    %261 = vmatpush1.msra.mxu0 %v112
    %262 = vmatprep.subr.mxu0 0.0
    %263 = vmatpush1.msra.mxu0 0.0
    %264 = vmatprep.subr.mxu0 0.0
    %265 = vmatpush1.msra.mxu0 0.0
    %266 = vmatprep.subr.mxu0 0.0
    %267 = vmatpush1.msra.mxu0 0.0
    %268 = vmatprep.subr.mxu0 0.0
    %269 = vmatpush1.msra.mxu0 0.0
    %270 = vmatprep.subr.mxu0 0.0
    %271 = vmatpush1.msra.mxu0 0.0
    %272 = vmatprep.subr.mxu0 0.0
    %273 = vmatpush1.msra.mxu0 0.0
    %274 = vmatprep.subr.mxu0 0.0
    %275 = vmatpush1.msra.mxu0 0.0
    %276 = vmatprep.subr.mxu0 0.0
    %277 = vmatpush1.msra.mxu0 0.0
    %278 = vmatprep.subr.mxu0 0.0
    %279 = vmatpush1.msra.mxu0 0.0
    %280 = vmatprep.subr.mxu0 0.0
    %281 = vmatpush1.msra.mxu0 0.0
    %282 = vmatprep.subr.mxu0 0.0
    %283 = vmatpush1.msra.mxu0 0.0
    %284 = vmatprep.subr.mxu0 0.0
    %285 = vmatpush1.msra.mxu0 0.0
    %286 = vmatprep.subr.mxu0 0.0
    %287 = vmatpush1.msra.mxu0 0.0
    %288 = vmatprep.subr.mxu0 0.0
    %289 = vmatpush1.msra.mxu0 0.0
    %290 = vmatprep.mubr.f32.mxu0 %v144
    %291 = vmatmul.mubr.f32.gmra.mrb[0].mxu0 %v21
    %v292 = vpop.f32.mrb[0].mxu0
    %v293 = vadd.f32 %v128, %v292
    %v294 = vpop.f32.mrb[0].mxu0
    %v295 = vadd.f32 %v132, %v294
    %296 = vmatprep.mubr.f32.mxu0 %v147
    %297 = vmatmul.mubr.f32.gmra.mrb[0].mxu0 %v23
    %v298 = vpop.f32.mrb[0].mxu0
    %v299 = vadd.f32 %v128, %v298
    %v300 = vpop.f32.mrb[0].mxu0
    %v301 = vadd.f32 %v132, %v300
    %302 = vdwg.mxu0
    %303 = vmatprep.subr.mxu0 0.0
    %304 = vmatpush1.msra.mxu0 %v29
    %305 = vmatprep.subr.mxu0 0.0
    %306 = vmatpush1.msra.mxu0 %v34
    %307 = vmatprep.subr.mxu0 0.0
    %308 = vmatpush1.msra.mxu0 %v39
    %309 = vmatprep.subr.mxu0 0.0
    %310 = vmatpush1.msra.mxu0 %v44
    %311 = vmatprep.subr.mxu0 0.0
    %312 = vmatpush1.msra.mxu0 %v49
    %313 = vmatprep.subr.mxu0 0.0
    %314 = vmatpush1.msra.mxu0 %v54
    %315 = vmatprep.subr.mxu0 0.0
    %316 = vmatpush1.msra.mxu0 %v59
    %317 = vmatprep.subr.mxu0 0.0
    %318 = vmatpush1.msra.mxu0 %v64
    %319 = vmatprep.subr.mxu0 0.0
    %320 = vmatpush1.msra.mxu0 %v69
    %321 = vmatprep.subr.mxu0 0.0
    %322 = vmatpush1.msra.mxu0 %v74
    %323 = vmatprep.subr.mxu0 0.0
    %324 = vmatpush1.msra.mxu0 %v79
    %325 = vmatprep.subr.mxu0 0.0
    %326 = vmatpush1.msra.mxu0 %v84
    %327 = vmatprep.subr.mxu0 0.0
    %328 = vmatpush1.msra.mxu0 %v89
    %329 = vmatprep.subr.mxu0 0.0
    %330 = vmatpush1.msra.mxu0 %v94
    %331 = vmatprep.subr.mxu0 0.0
    %332 = vmatpush1.msra.mxu0 %v99
    %333 = vmatprep.subr.mxu0 0.0
    %334 = vmatpush1.msra.mxu0 %v104
    %335 = vmatprep.subr.mxu0 0.0
    %336 = vmatpush1.msra.mxu0 %v109
    %337 = vmatprep.subr.mxu0 0.0
    %338 = vmatpush1.msra.mxu0 %v114
    %339 = vmatprep.subr.mxu0 0.0
    %340 = vmatpush1.msra.mxu0 0.0
    %341 = vmatprep.subr.mxu0 0.0
    %342 = vmatpush1.msra.mxu0 0.0
    %343 = vmatprep.subr.mxu0 0.0
    %344 = vmatpush1.msra.mxu0 0.0
    %345 = vmatprep.subr.mxu0 0.0
    %346 = vmatpush1.msra.mxu0 0.0
    %347 = vmatprep.subr.mxu0 0.0
    %348 = vmatpush1.msra.mxu0 0.0
    %349 = vmatprep.subr.mxu0 0.0
    %350 = vmatpush1.msra.mxu0 0.0
    %351 = vmatprep.subr.mxu0 0.0
    %352 = vmatpush1.msra.mxu0 0.0
    %353 = vmatprep.subr.mxu0 0.0
    %354 = vmatpush1.msra.mxu0 0.0
    %355 = vmatprep.subr.mxu0 0.0
    %356 = vmatpush1.msra.mxu0 0.0
    %357 = vmatprep.subr.mxu0 0.0
    %358 = vmatpush1.msra.mxu0 0.0
    %359 = vmatprep.subr.mxu0 0.0
    %360 = vmatpush1.msra.mxu0 0.0
    %361 = vmatprep.subr.mxu0 0.0
    %362 = vmatpush1.msra.mxu0 0.0
    %363 = vmatprep.subr.mxu0 0.0
    %364 = vmatpush1.msra.mxu0 0.0
    %365 = vmatprep.subr.mxu0 0.0
    %366 = vmatpush1.msra.mxu0 0.0
    %367 = vmatprep.mubr.f32.mxu0 %v144
    %368 = vmatmul.mubr.f32.gmra.mrb[0].mxu0 %v21
    %v369 = vpop.f32.mrb[0].mxu0
    %v370 = vadd.f32 %v136, %v369
    %v371 = vpop.f32.mrb[0].mxu0
    %372 = vmatprep.mubr.f32.mxu0 %v147
    %373 = vmatmul.mubr.f32.gmra.mrb[0].mxu0 %v23
    %v374 = vpop.f32.mrb[0].mxu0
    %v375 = vadd.f32 %v136, %v374
    %v376 = vpop.f32.mrb[0].mxu0
    %377 = vdwg.mxu0
    %v378 = vmax.f32 %v216, 0.0
    %v379 = vmax.f32 %v218, 0.0
    %v380 = vmax.f32 %v293, 0.0
    %v381 = vmax.f32 %v295, 0.0
    %v382 = vmax.f32 %v370, 0.0
    %v383 = vmax.f32 %v222, 0.0
    %v384 = vmax.f32 %v224, 0.0
    %v385 = vmax.f32 %v299, 0.0
    %v386 = vmax.f32 %v301, 0.0
    %v387 = vmax.f32 %v375, 0.0
    %v388 = vld [vmem:[%s3] sm:$0xff]
    %v389 = vld [vmem:[%s3 + $0x8] sm:$0xff]
    %v390 = vld [vmem:[%s3 + $0x10] sm:$0xff]
    %v391 = vld [vmem:[%s3 + $0x18] sm:$0xff]
    %v392 = vld [vmem:[%s3 + $0x20] sm:$0xff]
    %v393 = vld [vmem:[%s3 + $0x28] sm:$0xff]
    %v394 = vld [vmem:[%s3 + $0x30] sm:$0xff]
    %v395 = vld [vmem:[%s3 + $0x38] sm:$0xff]
    %v396 = vld [vmem:[%s3 + $0x40] sm:$0xff]
    %v397 = vld [vmem:[%s3 + $0x48] sm:$0xff]
    %v398 = vld [vmem:[%s3 + $0x50] sm:$0xff]
    %v399 = vld [vmem:[%s3 + $0x58] sm:$0xff]
    %v400 = vld [vmem:[%s3 + $0x60] sm:$0xff]
    %v401 = vld [vmem:[%s3 + $0x68] sm:$0xff]
    %v402 = vld [vmem:[%s3 + $0x70] sm:$0xff]
    %v403 = vld [vmem:[%s3 + $0x78] sm:$0xff]
    %v404 = vld [vmem:[%s3 + $0x80] sm:$0xff]
    %v405 = vld [vmem:[%s3 + $0x88] sm:$0xff]
    %v406 = vld [vmem:[%s3 + $0x90] sm:$0xff]
    %v407 = vld [vmem:[%s3 + $0x98] sm:$0xff]
    %v408 = vld [vmem:[%s3 + $0xa0] sm:$0xff]
    %v409 = vld [vmem:[%s3 + $0xa8] sm:$0xff]
    %v410 = vld [vmem:[%s3 + $0xb0] sm:$0xff]
    %v411 = vld [vmem:[%s3 + $0xb8] sm:$0xff]
    %v412 = vld [vmem:[%s3 + $0xc0] sm:$0xff]
    %v413 = vld [vmem:[%s3 + $0xc8] sm:$0xff]
    %v414 = vld [vmem:[%s3 + $0xd0] sm:$0xff]
    %v415 = vld [vmem:[%s3 + $0xd8] sm:$0xff]
    %v416 = vld [vmem:[%s3 + $0xe0] sm:$0xff]
    %v417 = vld [vmem:[%s3 + $0xe8] sm:$0xff]
    %v418 = vld [vmem:[%s3 + $0xf0] sm:$0xff]
    %v419 = vld [vmem:[%s3 + $0xf8] sm:$0xff]
    %v420 = vld [vmem:[%s3 + $0x100] sm:$0xff]
    %v421 = vld [vmem:[%s3 + $0x108] sm:$0xff]
    %v422 = vld [vmem:[%s3 + $0x110] sm:$0xff]
    %v423 = vld [vmem:[%s3 + $0x118] sm:$0xff]
    %v424 = vld [vmem:[%s3 + $0x120] sm:$0xff]
    %v425 = vld [vmem:[%s3 + $0x128] sm:$0xff]
    %v426 = vld [vmem:[%s3 + $0x130] sm:$0xff]
    %v427 = vld [vmem:[%s3 + $0x138] sm:$0xff]
    %v428 = vld [vmem:[%s3 + $0x140] sm:$0xff]
    %v429 = vld [vmem:[%s3 + $0x148] sm:$0xff]
    %v430 = vld [vmem:[%s3 + $0x150] sm:$0xff]
    %v431 = vld [vmem:[%s3 + $0x158] sm:$0xff]
    %v432 = vld [vmem:[%s3 + $0x160] sm:$0xff]
    %v433 = vld [vmem:[%s3 + $0x168] sm:$0xff]
    %v434 = vld [vmem:[%s3 + $0x170] sm:$0xff]
    %v435 = vld [vmem:[%s3 + $0x178] sm:$0xff]
    %v436 = vld [vmem:[%s3 + $0x180] sm:$0xff]
    %v437 = vld [vmem:[%s3 + $0x188] sm:$0xff]
    %v438 = vld [vmem:[%s3 + $0x190] sm:$0xff]
    %v439 = vld [vmem:[%s3 + $0x198] sm:$0xff]
    %v440 = vld [vmem:[%s3 + $0x1a0] sm:$0xff]
    %v441 = vld [vmem:[%s3 + $0x1a8] sm:$0xff]
    %v442 = vld [vmem:[%s3 + $0x1b0] sm:$0xff]
    %v443 = vld [vmem:[%s3 + $0x1b8] sm:$0xff]
    %v444 = vld [vmem:[%s3 + $0x1c0] sm:$0xff]
    %v445 = vld [vmem:[%s3 + $0x1c8] sm:$0xff]
    %v446 = vld [vmem:[%s3 + $0x1d0] sm:$0xff]
    %v447 = vld [vmem:[%s3 + $0x1d8] sm:$0xff]
    %v448 = vld [vmem:[%s3 + $0x1e0] sm:$0xff]
    %v449 = vld [vmem:[%s3 + $0x1e8] sm:$0xff]
    %v450 = vld [vmem:[%s3 + $0x1f0] sm:$0xff]
    %v451 = vld [vmem:[%s3 + $0x1f8] sm:$0xff]
    %v452 = vld [vmem:[%s3 + $0x200] sm:$0xff]
    %v453 = vld [vmem:[%s3 + $0x208] sm:$0xff]
    %v454 = vld [vmem:[%s3 + $0x210] sm:$0xff]
    %v455 = vld [vmem:[%s3 + $0x218] sm:$0xff]
    %v456 = vld [vmem:[%s3 + $0x220] sm:$0xff]
    %v457 = vld [vmem:[%s3 + $0x228] sm:$0xff]
    %v458 = vld [vmem:[%s3 + $0x230] sm:$0xff]
    %v459 = vld [vmem:[%s3 + $0x238] sm:$0xff]
    %v460 = vld [vmem:[%s3 + $0x240] sm:$0xff]
    %v461 = vld [vmem:[%s3 + $0x248] sm:$0xff]
    %v462 = vld [vmem:[%s3 + $0x250] sm:$0xff]
    %v463 = vld [vmem:[%s3 + $0x258] sm:$0xff]
    %v464 = vld [vmem:[%s3 + $0x260] sm:$0xff]
    %v465 = vld [vmem:[%s3 + $0x268] sm:$0xff]
    %v466 = vld [vmem:[%s3 + $0x270] sm:$0xff]
    %v467 = vld [vmem:[%s3 + $0x278] sm:$0xff]
    %v468 = vld [vmem:[%s3 + $0x280] sm:$0xff]
    %v469 = vld [vmem:[%s3 + $0x288] sm:$0xff]
    %v470 = vld [vmem:[%s3 + $0x290] sm:$0xff]
    %v471 = vld [vmem:[%s3 + $0x298] sm:$0xff]
    %v472 = vld [vmem:[%s3 + $0x2a0] sm:$0xff]
    %v473 = vld [vmem:[%s3 + $0x2a8] sm:$0xff]
    %v474 = vld [vmem:[%s3 + $0x2b0] sm:$0xff]
    %v475 = vld [vmem:[%s3 + $0x2b8] sm:$0xff]
    %v476 = vld [vmem:[%s3 + $0x2c0] sm:$0xff]
    %v477 = vld [vmem:[%s3 + $0x2c8] sm:$0xff]
    %v478 = vld [vmem:[%s3 + $0x2d0] sm:$0xff]
    %v479 = vld [vmem:[%s3 + $0x2d8] sm:$0xff]
    %v480 = vld [vmem:[%s3 + $0x2e0] sm:$0xff]
    %v481 = vld [vmem:[%s3 + $0x2e8] sm:$0xff]
    %v482 = vld [vmem:[%s3 + $0x2f0] sm:$0xff]
    %v483 = vld [vmem:[%s3 + $0x2f8] sm:$0xff]
    %v484 = vld [vmem:[%s3 + $0x300] sm:$0xff]
    %v485 = vld [vmem:[%s3 + $0x308] sm:$0xff]
    %v486 = vld [vmem:[%s3 + $0x310] sm:$0xff]
    %v487 = vld [vmem:[%s3 + $0x318] sm:$0xff]
    %v488 = vld [vmem:[%s3 + $0x320] sm:$0xff]
    %v489 = vld [vmem:[%s3 + $0x328] sm:$0xff]
    %v490 = vld [vmem:[%s3 + $0x330] sm:$0xff]
    %v491 = vld [vmem:[%s3 + $0x338] sm:$0xff]
    %v492 = vld [vmem:[%s3 + $0x340] sm:$0xff]
    %v493 = vld [vmem:[%s3 + $0x348] sm:$0xff]
    %v494 = vld [vmem:[%s3 + $0x350] sm:$0xff]
    %v495 = vld [vmem:[%s3 + $0x358] sm:$0xff]
    %v496 = vld [vmem:[%s3 + $0x360] sm:$0xff]
    %v497 = vld [vmem:[%s3 + $0x368] sm:$0xff]
    %v498 = vld [vmem:[%s3 + $0x370] sm:$0xff]
    %v499 = vld [vmem:[%s3 + $0x378] sm:$0xff]
    %v500 = vld [vmem:[%s3 + $0x380] sm:$0xff]
    %v501 = vld [vmem:[%s3 + $0x388] sm:$0xff]
    %v502 = vld [vmem:[%s3 + $0x390] sm:$0xff]
    %v503 = vld [vmem:[%s3 + $0x398] sm:$0xff]
    %v504 = vld [vmem:[%s3 + $0x3a0] sm:$0xff]
    %v505 = vld [vmem:[%s3 + $0x3a8] sm:$0xff]
    %v506 = vld [vmem:[%s3 + $0x3b0] sm:$0xff]
    %v507 = vld [vmem:[%s3 + $0x3b8] sm:$0xff]
    %v508 = vld [vmem:[%s3 + $0x3c0] sm:$0xff]
    %v509 = vld [vmem:[%s3 + $0x3c8] sm:$0xff]
    %v510 = vld [vmem:[%s3 + $0x3d0] sm:$0xff]
    %v511 = vld [vmem:[%s3 + $0x3d8] sm:$0xff]
    %v512 = vld [vmem:[%s3 + $0x3e0] sm:$0xff]
    %v513 = vld [vmem:[%s3 + $0x3e8] sm:$0xff]
    %v514 = vld [vmem:[%s3 + $0x3f0] sm:$0xff]
    %v515 = vld [vmem:[%s3 + $0x3f8] sm:$0xff]
    %v516 = vld [vmem:[%s3 + $0x400] sm:$0xff]
    %v517 = vld [vmem:[%s3 + $0x408] sm:$0xff]
    %v518 = vld [vmem:[%s3 + $0x410] sm:$0xff]
    %v519 = vld [vmem:[%s3 + $0x418] sm:$0xff]
    %v520 = vld [vmem:[%s3 + $0x420] sm:$0xff]
    %v521 = vld [vmem:[%s3 + $0x428] sm:$0xff]
    %v522 = vld [vmem:[%s3 + $0x430] sm:$0xff]
    %v523 = vld [vmem:[%s3 + $0x438] sm:$0xff]
    %v524 = vld [vmem:[%s3 + $0x440] sm:$0xff]
    %v525 = vld [vmem:[%s3 + $0x448] sm:$0xff]
    %v526 = vld [vmem:[%s3 + $0x450] sm:$0xff]
    %v527 = vld [vmem:[%s3 + $0x458] sm:$0xff]
    %v528 = vld [vmem:[%s3 + $0x460] sm:$0xff]
    %v529 = vld [vmem:[%s3 + $0x468] sm:$0xff]
    %v530 = vld [vmem:[%s3 + $0x470] sm:$0xff]
    %v531 = vld [vmem:[%s3 + $0x478] sm:$0xff]
    %v532 = vld [vmem:[%s4] sm:$0x3]
    %v534 = vlaneseq
    %v535 = vshrl.u32 %v534, 7
    %v536 = vsub.s32 0, %v535
    %v537 = vrot.slane %v532, %v536
    %v538 = vlaneseq
    %v539 = vshrl.u32 %v538, 7
    %v540 = vsub.s32 1, %v539
    %v541 = vrot.slane %v532, %v540
    %vm544 = vcmask 523264
    %v546 = vsel %vm544, %v382, 0
    %v549 = vsel %vm544, %v387, 0
    %551 = vmatprep.subr.mxu0 %v389
    %552 = vmatpush1.msra.mxu0 %v388
    %553 = vmatprep.subr.mxu0 %v391
    %554 = vmatpush1.msra.mxu0 %v390
    %555 = vmatprep.subr.mxu0 %v393
    %556 = vmatpush1.msra.mxu0 %v392
    %557 = vmatprep.subr.mxu0 %v395
    %558 = vmatpush1.msra.mxu0 %v394
    %559 = vmatprep.subr.mxu0 %v397
    %560 = vmatpush1.msra.mxu0 %v396
    %561 = vmatprep.subr.mxu0 %v399
    %562 = vmatpush1.msra.mxu0 %v398
    %563 = vmatprep.subr.mxu0 %v401
    %564 = vmatpush1.msra.mxu0 %v400
    %565 = vmatprep.subr.mxu0 %v403
    %566 = vmatpush1.msra.mxu0 %v402
    %567 = vmatprep.subr.mxu0 %v405
    %568 = vmatpush1.msra.mxu0 %v404
    %569 = vmatprep.subr.mxu0 %v407
    %570 = vmatpush1.msra.mxu0 %v406
    %571 = vmatprep.subr.mxu0 %v409
    %572 = vmatpush1.msra.mxu0 %v408
    %573 = vmatprep.subr.mxu0 %v411
    %574 = vmatpush1.msra.mxu0 %v410
    %575 = vmatprep.subr.mxu0 %v413
    %576 = vmatpush1.msra.mxu0 %v412
    %577 = vmatprep.subr.mxu0 %v415
    %578 = vmatpush1.msra.mxu0 %v414
    %579 = vmatprep.subr.mxu0 %v417
    %580 = vmatpush1.msra.mxu0 %v416
    %581 = vmatprep.subr.mxu0 %v419
    %582 = vmatpush1.msra.mxu0 %v418
    %583 = vmatprep.subr.mxu0 %v421
    %584 = vmatpush1.msra.mxu0 %v420
    %585 = vmatprep.subr.mxu0 %v423
    %586 = vmatpush1.msra.mxu0 %v422
    %587 = vmatprep.subr.mxu0 %v425
    %588 = vmatpush1.msra.mxu0 %v424
    %589 = vmatprep.subr.mxu0 %v427
    %590 = vmatpush1.msra.mxu0 %v426
    %591 = vmatprep.subr.mxu0 %v429
    %592 = vmatpush1.msra.mxu0 %v428
    %593 = vmatprep.subr.mxu0 %v431
    %594 = vmatpush1.msra.mxu0 %v430
    %595 = vmatprep.subr.mxu0 %v433
    %596 = vmatpush1.msra.mxu0 %v432
    %597 = vmatprep.subr.mxu0 %v435
    %598 = vmatpush1.msra.mxu0 %v434
    %599 = vmatprep.subr.mxu0 %v437
    %600 = vmatpush1.msra.mxu0 %v436
    %601 = vmatprep.subr.mxu0 %v439
    %602 = vmatpush1.msra.mxu0 %v438
    %603 = vmatprep.subr.mxu0 %v441
    %604 = vmatpush1.msra.mxu0 %v440
    %605 = vmatprep.subr.mxu0 %v443
    %606 = vmatpush1.msra.mxu0 %v442
    %607 = vmatprep.subr.mxu0 %v445
    %608 = vmatpush1.msra.mxu0 %v444
    %609 = vmatprep.subr.mxu0 %v447
    %610 = vmatpush1.msra.mxu0 %v446
    %611 = vmatprep.subr.mxu0 %v449
    %612 = vmatpush1.msra.mxu0 %v448
    %613 = vmatprep.subr.mxu0 %v451
    %614 = vmatpush1.msra.mxu0 %v450
    %615 = vmatprep.mubr.f32.mxu0 %v379
    %616 = vmatmul.mubr.f32.gmra.mrb[0].mxu0 %v378
    %v617 = vpop.f32.mrb[0].mxu0
    %v618 = vadd.f32 %v537, %v617
    %v619 = vpop.f32.mrb[0].mxu0
    %v620 = vadd.f32 %v541, %v619
    %621 = vmatprep.mubr.f32.mxu0 %v384
    %622 = vmatmul.mubr.f32.gmra.mrb[0].mxu0 %v383
    %v623 = vpop.f32.mrb[0].mxu0
    %v624 = vadd.f32 %v537, %v623
    %v625 = vpop.f32.mrb[0].mxu0
    %v626 = vadd.f32 %v541, %v625
    %627 = vdwg.mxu0
    %628 = vmatprep.subr.mxu0 %v453
    %629 = vmatpush1.msra.mxu0 %v452
    %630 = vmatprep.subr.mxu0 %v455
    %631 = vmatpush1.msra.mxu0 %v454
    %632 = vmatprep.subr.mxu0 %v457
    %633 = vmatpush1.msra.mxu0 %v456
    %634 = vmatprep.subr.mxu0 %v459
    %635 = vmatpush1.msra.mxu0 %v458
    %636 = vmatprep.subr.mxu0 %v461
    %637 = vmatpush1.msra.mxu0 %v460
    %638 = vmatprep.subr.mxu0 %v463
    %639 = vmatpush1.msra.mxu0 %v462
    %640 = vmatprep.subr.mxu0 %v465
    %641 = vmatpush1.msra.mxu0 %v464
    %642 = vmatprep.subr.mxu0 %v467
    %643 = vmatpush1.msra.mxu0 %v466
    %644 = vmatprep.subr.mxu0 %v469
    %645 = vmatpush1.msra.mxu0 %v468
    %646 = vmatprep.subr.mxu0 %v471
    %647 = vmatpush1.msra.mxu0 %v470
    %648 = vmatprep.subr.mxu0 %v473
    %649 = vmatpush1.msra.mxu0 %v472
    %650 = vmatprep.subr.mxu0 %v475
    %651 = vmatpush1.msra.mxu0 %v474
    %652 = vmatprep.subr.mxu0 %v477
    %653 = vmatpush1.msra.mxu0 %v476
    %654 = vmatprep.subr.mxu0 %v479
    %655 = vmatpush1.msra.mxu0 %v478
    %656 = vmatprep.subr.mxu0 %v481
    %657 = vmatpush1.msra.mxu0 %v480
    %658 = vmatprep.subr.mxu0 %v483
    %659 = vmatpush1.msra.mxu0 %v482
    %660 = vmatprep.subr.mxu0 %v485
    %661 = vmatpush1.msra.mxu0 %v484
    %662 = vmatprep.subr.mxu0 %v487
    %663 = vmatpush1.msra.mxu0 %v486
    %664 = vmatprep.subr.mxu0 %v489
    %665 = vmatpush1.msra.mxu0 %v488
    %666 = vmatprep.subr.mxu0 %v491
    %667 = vmatpush1.msra.mxu0 %v490
    %668 = vmatprep.subr.mxu0 %v493
    %669 = vmatpush1.msra.mxu0 %v492
    %670 = vmatprep.subr.mxu0 %v495
    %671 = vmatpush1.msra.mxu0 %v494
    %672 = vmatprep.subr.mxu0 %v497
    %673 = vmatpush1.msra.mxu0 %v496
    %674 = vmatprep.subr.mxu0 %v499
    %675 = vmatpush1.msra.mxu0 %v498
    %676 = vmatprep.subr.mxu0 %v501
    %677 = vmatpush1.msra.mxu0 %v500
    %678 = vmatprep.subr.mxu0 %v503
    %679 = vmatpush1.msra.mxu0 %v502
    %680 = vmatprep.subr.mxu0 %v505
    %681 = vmatpush1.msra.mxu0 %v504
    %682 = vmatprep.subr.mxu0 %v507
    %683 = vmatpush1.msra.mxu0 %v506
    %684 = vmatprep.subr.mxu0 %v509
    %685 = vmatpush1.msra.mxu0 %v508
    %686 = vmatprep.subr.mxu0 %v511
    %687 = vmatpush1.msra.mxu0 %v510
    %688 = vmatprep.subr.mxu0 %v513
    %689 = vmatpush1.msra.mxu0 %v512
    %690 = vmatprep.subr.mxu0 %v515
    %691 = vmatpush1.msra.mxu0 %v514
    %692 = vmatprep.mubr.f32.mxu0 %v381
    %693 = vmatmul.mubr.f32.gmra.mrb[0].mxu0 %v380
    %v694 = vpop.f32.mrb[0].mxu0
    %v695 = vadd.f32 %v618, %v694
    %v696 = vpop.f32.mrb[0].mxu0
    %v697 = vadd.f32 %v620, %v696
    %698 = vmatprep.mubr.f32.mxu0 %v386
    %699 = vmatmul.mubr.f32.gmra.mrb[0].mxu0 %v385
    %v700 = vpop.f32.mrb[0].mxu0
    %v701 = vadd.f32 %v624, %v700
    %v702 = vpop.f32.mrb[0].mxu0
    %v703 = vadd.f32 %v626, %v702
    %704 = vdwg.mxu0
    %705 = vmatprep.subr.mxu0 %v517
    %706 = vmatpush1.msra.mxu0 %v516
    %707 = vmatprep.subr.mxu0 %v519
    %708 = vmatpush1.msra.mxu0 %v518
    %709 = vmatprep.subr.mxu0 %v521
    %710 = vmatpush1.msra.mxu0 %v520
    %711 = vmatprep.subr.mxu0 %v523
    %712 = vmatpush1.msra.mxu0 %v522
    %713 = vmatprep.subr.mxu0 %v525
    %714 = vmatpush1.msra.mxu0 %v524
    %715 = vmatprep.subr.mxu0 %v527
    %716 = vmatpush1.msra.mxu0 %v526
    %717 = vmatprep.subr.mxu0 %v529
    %718 = vmatpush1.msra.mxu0 %v528
    %719 = vmatprep.subr.mxu0 %v531
    %720 = vmatpush1.msra.mxu0 %v530
    %721 = vmatprep.subr.mxu0 0.0
    %722 = vmatpush1.msra.mxu0 0.0
    %723 = vmatprep.subr.mxu0 0.0
    %724 = vmatpush1.msra.mxu0 0.0
    %725 = vmatprep.subr.mxu0 0.0
    %726 = vmatpush1.msra.mxu0 0.0
    %727 = vmatprep.subr.mxu0 0.0
    %728 = vmatpush1.msra.mxu0 0.0
    %729 = vmatprep.subr.mxu0 0.0
    %730 = vmatpush1.msra.mxu0 0.0
    %731 = vmatprep.subr.mxu0 0.0
    %732 = vmatpush1.msra.mxu0 0.0
    %733 = vmatprep.subr.mxu0 0.0
    %734 = vmatpush1.msra.mxu0 0.0
    %735 = vmatprep.subr.mxu0 0.0
    %736 = vmatpush1.msra.mxu0 0.0
    %737 = vmatprep.subr.mxu0 0.0
    %738 = vmatpush1.msra.mxu0 0.0
    %739 = vmatprep.subr.mxu0 0.0
    %740 = vmatpush1.msra.mxu0 0.0
    %741 = vmatprep.subr.mxu0 0.0
    %742 = vmatpush1.msra.mxu0 0.0
    %743 = vmatprep.subr.mxu0 0.0
    %744 = vmatpush1.msra.mxu0 0.0
    %745 = vmatprep.subr.mxu0 0.0
    %746 = vmatpush1.msra.mxu0 0.0
    %747 = vmatprep.subr.mxu0 0.0
    %748 = vmatpush1.msra.mxu0 0.0
    %749 = vmatprep.subr.mxu0 0.0
    %750 = vmatpush1.msra.mxu0 0.0
    %751 = vmatprep.subr.mxu0 0.0
    %752 = vmatpush1.msra.mxu0 0.0
    %753 = vmatprep.subr.mxu0 0.0
    %754 = vmatpush1.msra.mxu0 0.0
    %755 = vmatprep.subr.mxu0 0.0
    %756 = vmatpush1.msra.mxu0 0.0
    %757 = vmatprep.subr.mxu0 0.0
    %758 = vmatpush1.msra.mxu0 0.0
    %759 = vmatprep.subr.mxu0 0.0
    %760 = vmatpush1.msra.mxu0 0.0
    %761 = vmatprep.subr.mxu0 0.0
    %762 = vmatpush1.msra.mxu0 0.0
    %763 = vmatprep.subr.mxu0 0.0
    %764 = vmatpush1.msra.mxu0 0.0
    %765 = vmatprep.subr.mxu0 0.0
    %766 = vmatpush1.msra.mxu0 0.0
    %767 = vmatprep.subr.mxu0 0.0
    %768 = vmatpush1.msra.mxu0 0.0
    %769 = vmatprep.mubr.f32.mxu0 0.0
    %770 = vmatmul.mubr.f32.gmra.mrb[0].mxu0 %v546
    %v771 = vpop.f32.mrb[0].mxu0
    %v772 = vadd.f32 %v695, %v771
    %v773 = vpop.f32.mrb[0].mxu0
    %v774 = vadd.f32 %v697, %v773
    %775 = vmatprep.mubr.f32.mxu0 0.0
    %776 = vmatmul.mubr.f32.gmra.mrb[0].mxu0 %v549
    %v777 = vpop.f32.mrb[0].mxu0
    %v778 = vadd.f32 %v701, %v777
    %v779 = vpop.f32.mrb[0].mxu0
    %v780 = vadd.f32 %v703, %v779
    %781 = vdwg.mxu0
    %782 = vst [vmem:[#allocation2] sm:$0xff] %v772
    %783 = vst.msk [vmem:[#allocation2 + $0x8] sm:$0xff] %vm142, %v774
    %784 = vst [vmem:[#allocation2 + $0x10] sm:$0xff] %v778
    %785 = vst.msk [vmem:[#allocation2 + $0x18] sm:$0xff] %vm142, %v780
    // Predicated region
    $region22: #{tpu_custom_call.1} parent=1 // pred_check
      _
    $region23: #{tpu_custom_call.1} parent=1 // pred_check_branch
      %787 = sbr.rel (0) target = $region25
    $region24: #{tpu_custom_call.1} parent=1 // pred_region
      %s789 = ssub.s32 512, 512
      %790 = vsyncadd [#allocation3], %s789
      %s791 = sshll.u32 [#allocation2], 4
      %s792 = int_to_ptr.vmem [resolvable:$true] %s791
      %797 = dma.vmem_to_hbm [thread:$0]  %s792, 512, %s5, [#allocation3], 256, 256, 16
    $region25: #{tpu_custom_call.1} parent=1 // pred_fallthru
      _
    // Predicated region
    $region26: #{tpu_custom_call.1} parent=1 // pred_check
      _
    $region27: #{tpu_custom_call.1} parent=1 // pred_check_branch
      %799 = sbr.rel (0) target = $region29
    $region28: #{tpu_custom_call.1} parent=1 // pred_region
      %800 = dma.done [#allocation3], 512
    $region29: #{tpu_custom_call.1} parent=1 // pred_fallthru
      _
    %801 = vsyncpa [#allocation3], 1

</llo_original>
